<compile_context>
chip_gen: v7x
topology: tpu7x:2x2x1
jax: 0.10.0
libtpu: 0.0.40
codegen_flags: <defaults>
</compile_context>

<pallas_src>
import functools
import math
import numpy as np

import jax
import jax.numpy as jnp
from jax.experimental import pallas as pl
from jax.experimental.pallas import tpu as pltpu


def _round_up(x, m):
    return (x + m - 1) // m * m


def _sigmoid(x):
    # EUP reciprocal; denominator computed in f32.
    return pl.reciprocal(1.0 + jnp.exp(-x), approx=True)


# ---------------------------------------------------------------------------
# Kernel 1: tiled matmul + bias + activation (bf16 MXU operands, f32 acc).
# grid = (M/tm, N/tn, K/tk), K last ('arbitrary'), acc scratch init/finalize.
# ---------------------------------------------------------------------------
def _mm_kernel(x_ref, w_ref, b_ref, o_ref, acc_ref, *, act):
    k = pl.program_id(2)

    @pl.when(k == 0)
    def _():
        acc_ref[...] = jnp.zeros_like(acc_ref)

    acc_ref[...] += jnp.dot(x_ref[...], w_ref[...],
                            preferred_element_type=jnp.float32)

    @pl.when(k == pl.num_programs(2) - 1)
    def _():
        acc = acc_ref[...] + b_ref[...]
        if act == "relu":
            acc = jnp.maximum(acc, 0.0)
        elif act == "relu6":
            acc = jnp.clip(acc, 0.0, 6.0)
        elif act == "silu":
            acc = acc * _sigmoid(acc)
        elif act == "softplus":
            acc = jnp.where(acc > 20.0, acc,
                            jnp.log(1.0 + jnp.exp(jnp.minimum(acc, 20.0))))
        elif act == "softmax":
            m = jnp.max(acc, axis=-1, keepdims=True)
            e = jnp.exp(acc - m)
            acc = e / jnp.sum(e, axis=-1, keepdims=True)
        o_ref[...] = acc


def mm(x, w, b=None, act="none"):
    M, K = x.shape
    K2, N = w.shape
    assert K == K2
    # Tile sizes: sublane-multiple M tiles (16 for bf16 packing), lane-dense N/K.
    tm = min(128, _round_up(M, 16))
    tn = 128
    tk = min(256, _round_up(K, 128))
    Mp, Np, Kp = _round_up(M, tm), _round_up(N, tn), _round_up(K, tk)
    if act == "softmax":
        # Row-wise reduction must see the whole (padded) row in one N tile.
        assert Np == tn, "softmax epilogue requires N <= tn"
    if b is None:
        b = jnp.zeros((N,), jnp.float32)
    # Padded softmax columns get -inf-like bias so they vanish from the row sum.
    pad_val = -1e30 if act == "softmax" else 0.0
    bp = jnp.pad(b.astype(jnp.float32), (0, Np - N),
                 constant_values=pad_val).reshape(1, Np)
    xp = jnp.pad(x.astype(jnp.float32),
                 ((0, Mp - M), (0, Kp - K))).astype(jnp.bfloat16)
    wp = jnp.pad(w.astype(jnp.float32),
                 ((0, Kp - K), (0, Np - N))).astype(jnp.bfloat16)
    gm, gn, gk = Mp // tm, Np // tn, Kp // tk
    out = pl.pallas_call(
        functools.partial(_mm_kernel, act=act),
        out_shape=jax.ShapeDtypeStruct((Mp, Np), jnp.float32),
        grid=(gm, gn, gk),
        in_specs=[
            pl.BlockSpec((tm, tk), lambda i, j, k: (i, k)),
            pl.BlockSpec((tk, tn), lambda i, j, k: (k, j)),
            pl.BlockSpec((1, tn), lambda i, j, k: (0, j)),
        ],
        out_specs=pl.BlockSpec((tm, tn), lambda i, j, k: (i, j)),
        scratch_shapes=[pltpu.VMEM((tm, tn), jnp.float32)],
        compiler_params=pltpu.CompilerParams(
            dimension_semantics=("parallel", "parallel", "arbitrary"),
            vmem_limit_bytes=32 * 1024 * 1024),
    )(xp, wp, bp)
    return out[:M, :N]


# ---------------------------------------------------------------------------
# Kernel 2: depthwise causal Conv1d (kernel d_conv) + SiLU.
# Taps via pltpu.roll along the L (sublane) axis + iota masking; channels
# (d_inner, lane-padded to 128) on lanes.  Grid over batch ('parallel').
# ---------------------------------------------------------------------------
def _dwconv_kernel(x_ref, w_ref, b_ref, o_ref):
    x = x_ref[0]                                   # (L, C) f32
    L = x.shape[0]
    K = w_ref.shape[0]
    w = w_ref[...]
    acc = x * w[K - 1:K, :]                        # zero-shift tap
    row = jax.lax.broadcasted_iota(jnp.int32, (L, 1), 0)
    for k in range(K - 1):                         # static unroll (K = d_conv)
        shift = K - 1 - k
        xk = pltpu.roll(x, shift=shift, axis=0)
        xk = jnp.where(row >= shift, xk, 0.0)      # causal mask of wrapped rows
        acc = acc + xk * w[k:k + 1, :]
    acc = acc + b_ref[...]
    o_ref[0] = acc * _sigmoid(acc)                 # SiLU


def dwconv_silu(x, w, b):
    B, L, C = x.shape
    K = w.shape[0]
    return pl.pallas_call(
        _dwconv_kernel,
        out_shape=jax.ShapeDtypeStruct((B, L, C), jnp.float32),
        grid=(B,),
        in_specs=[
            pl.BlockSpec((1, L, C), lambda i: (i, 0, 0)),
            pl.BlockSpec((K, C), lambda i: (0, 0)),
            pl.BlockSpec((1, C), lambda i: (0, 0)),
        ],
        out_specs=pl.BlockSpec((1, L, C), lambda i: (i, 0, 0)),
        compiler_params=pltpu.CompilerParams(
            dimension_semantics=("parallel",)),
    )(x.astype(jnp.float32), w.astype(jnp.float32),
      b.reshape(1, C).astype(jnp.float32))


# ---------------------------------------------------------------------------
# Kernel 3: Mamba selective scan.  dA/dBu/readout computed in-kernel from the
# small per-step tensors; h carried in VMEM scratch across L-chunks; y chunk
# buffered in VMEM and written blockwise; includes +D*u and y*SiLU(z).
# grid = (B 'parallel', L/tl 'arbitrary').
# ---------------------------------------------------------------------------
def _scan_kernel(delta_ref, u_ref, bc_ref, z_ref, A_ref, D_ref, o_ref,
                 h_ref, y_ref):
    tl = u_ref.shape[1]

    @pl.when(pl.program_id(1) == 0)
    def _():
        h_ref[...] = jnp.zeros_like(h_ref)

    A = A_ref[...]                                         # (ds, din)

    def body(l, h):
        d_l = delta_ref[0, pl.ds(l, 1), :]                 # (1, din)
        u_l = u_ref[0, pl.ds(l, 1), :]                     # (1, din)
        bc_l = bc_ref[0, pl.ds(l, 1), :, :][0]             # (ds, 2)
        B_l = bc_l[:, 0:1]                                 # (ds, 1)
        C_l = bc_l[:, 1:2]                                 # (ds, 1)
        dA = jnp.exp(d_l * A)                              # (ds, din), EUP exp
        h = dA * h + (d_l * u_l) * B_l                     # recurrence
        y_ref[pl.ds(l, 1), :] = jnp.sum(h * C_l, axis=0, keepdims=True)
        return h

    h_ref[...] = jax.lax.fori_loop(0, tl, body, h_ref[...])

    y = y_ref[...] + u_ref[0] * D_ref[...]                 # skip (+D*u)
    zc = z_ref[0]
    o_ref[0] = y * (zc * _sigmoid(zc))                     # gate with SiLU(z)


def selective_scan(delta, u, Bm, Cm, A, D, z, tl_max=128):
    B, L, din_p = u.shape
    ds = Bm.shape[-1]
    tl = min(tl_max, L)
    assert L % tl == 0 and tl % 8 == 0
    bc = jnp.stack([Bm, Cm], axis=-1)                      # (B, L, ds, 2)
    return pl.pallas_call(
        _scan_kernel,
        out_shape=jax.ShapeDtypeStruct((B, L, din_p), jnp.float32),
        grid=(B, L // tl),
        in_specs=[
            pl.BlockSpec((1, tl, din_p), lambda b, lc: (b, lc, 0)),    # delta
            pl.BlockSpec((1, tl, din_p), lambda b, lc: (b, lc, 0)),    # u
            pl.BlockSpec((1, tl, ds, 2), lambda b, lc: (b, lc, 0, 0)), # B,C
            pl.BlockSpec((1, tl, din_p), lambda b, lc: (b, lc, 0)),    # z
            pl.BlockSpec((ds, din_p), lambda b, lc: (0, 0)),           # A
            pl.BlockSpec((1, din_p), lambda b, lc: (0, 0)),            # D
        ],
        out_specs=pl.BlockSpec((1, tl, din_p), lambda b, lc: (b, lc, 0)),
        scratch_shapes=[
            pltpu.VMEM((ds, din_p), jnp.float32),          # recurrent state h
            pltpu.VMEM((tl, din_p), jnp.float32),          # y chunk buffer
        ],
        compiler_params=pltpu.CompilerParams(
            dimension_semantics=("parallel", "arbitrary"),
            vmem_limit_bytes=32 * 1024 * 1024),
    )(delta.astype(jnp.float32), u.astype(jnp.float32), bc.astype(jnp.float32),
      z.astype(jnp.float32), A.astype(jnp.float32), D.astype(jnp.float32))


# ---------------------------------------------------------------------------
# Kernel 4: MLP head 3x3 ConvBNReLU6 + AdaptiveAvgPool2d(1) fused.
# 9 shifted taps built in-kernel with pltpu.roll + iota masks, each a bf16
# matmul into an f32 accumulator (no im2col blow-up in HBM).
# ---------------------------------------------------------------------------
def _conv3x3_gap_kernel(x_ref, w_ref, b_ref, o_ref, *, H, W):
    HW = H * W
    x = x_ref[0]                                           # (HW, Cin_p) f32
    l_idx = jax.lax.broadcasted_iota(jnp.int32, (HW, 1), 0)
    i_idx = l_idx // W
    j_idx = l_idx % W
    acc = jnp.zeros((HW, w_ref.shape[-1]), jnp.float32)
    t = 0
    for oi in (-1, 0, 1):
        for oj in (-1, 0, 1):
            shift = (-(oi * W + oj)) % HW
            xs = pltpu.roll(x, shift=shift, axis=0) if shift else x
            valid = ((i_idx + oi >= 0) & (i_idx + oi < H) &
                     (j_idx + oj >= 0) & (j_idx + oj < W))
            xs = jnp.where(valid, xs, 0.0).astype(jnp.bfloat16)
            acc = acc + jnp.dot(xs, w_ref[t],
                                preferred_element_type=jnp.float32)
            t += 1
    acc = jnp.clip(acc + b_ref[...], 0.0, 6.0)             # ReLU6 (BN folded)
    o_ref[0] = jnp.mean(acc, axis=0, keepdims=True)        # AdaptiveAvgPool2d(1)


def conv3x3_gap_relu6(x_nchw, w, b):
    B, C, H, W = x_nchw.shape
    HW = H * W
    Cp = _round_up(C, 128)
    x = jnp.transpose(x_nchw, (0, 2, 3, 1)).reshape(B, HW, C)
    x = jnp.pad(x, ((0, 0), (0, 0), (0, Cp - C))).astype(jnp.float32)
    wp = jnp.pad(w, ((0, 0), (0, Cp - C), (0, Cp - C))).astype(jnp.bfloat16)
    bp = jnp.pad(b, (0, Cp - C)).reshape(1, Cp).astype(jnp.float32)
    out = pl.pallas_call(
        functools.partial(_conv3x3_gap_kernel, H=H, W=W),
        out_shape=jax.ShapeDtypeStruct((B, 1, Cp), jnp.float32),
        grid=(B,),
        in_specs=[
            pl.BlockSpec((1, HW, Cp), lambda i: (i, 0, 0)),
            pl.BlockSpec((9, Cp, Cp), lambda i: (0, 0, 0)),
            pl.BlockSpec((1, Cp), lambda i: (0, 0)),
        ],
        out_specs=pl.BlockSpec((1, 1, Cp), lambda i: (i, 0, 0)),
        compiler_params=pltpu.CompilerParams(
            dimension_semantics=("parallel",)),
    )(x, wp, bp)
    return out.reshape(B, Cp)[:, :C]


# ---------------------------------------------------------------------------
# Deterministic adaptive-avg-pool / bilinear-interp matrices (PyTorch semantics).
# ---------------------------------------------------------------------------
def _adaptive_pool_1d(in_size, out_size):
    P = np.zeros((out_size, in_size), np.float32)
    for i in range(out_size):
        s = (i * in_size) // out_size
        e = -((-(i + 1) * in_size) // out_size)
        P[i, s:e] = 1.0 / (e - s)
    return P


def _bilinear_1d(out_size, in_size):
    Q = np.zeros((out_size, in_size), np.float32)
    if in_size == 1:
        Q[:, 0] = 1.0
        return Q
    scale = in_size / out_size
    for i in range(out_size):
        src = max(scale * (i + 0.5) - 0.5, 0.0)
        i0 = min(int(np.floor(src)), in_size - 1)
        i1 = min(i0 + 1, in_size - 1)
        l1 = src - i0
        Q[i, i0] += 1.0 - l1
        Q[i, i1] += l1
    return Q


def pool_matrix(hw_size, s):
    p1 = _adaptive_pool_1d(hw_size, s)
    return np.kron(p1, p1).T.astype(np.float32)


def interp_matrix(hw_size, s):
    q1 = _bilinear_1d(hw_size, s)
    return np.kron(q1, q1).T.astype(np.float32)


# ---------------------------------------------------------------------------
# Parameters (deterministic synthetic init; shapes follow the PyTorch module).
# ---------------------------------------------------------------------------
def init_params(key, cfg):
    in_img, in_pc = cfg["in_img"], cfg["in_pc"]
    dim, lf = cfg["dim"], cfg["last_feat"]
    Cc = in_img + in_pc + 2
    scales = list(range(1, lf, lf // 4))
    pool_len = len(scales)
    dm = dim * pool_len + Cc
    dinner = cfg["expand"] * dm
    dtr = math.ceil(dm / 16)
    ds = cfg["d_state"]
    h1, h2 = cfg["hidden"]
    nc = cfg["num_classes"]
    bn_s = 1.0 / np.sqrt(1.0 + 1e-5)   # eval-mode BN fold (gamma=1,beta=0,mu=0,var=1)

    keys = iter(jax.random.split(key, 40))

    def w(shape, scale=0.05):
        return scale * jax.random.normal(next(keys), shape, dtype=jnp.float32)

    p = {}
    p["ppm_w"] = [w((Cc, dim)) * bn_s for _ in range(pool_len)]
    p["ppm_b"] = [jnp.zeros((dim,), jnp.float32) for _ in range(pool_len)]
    # Mamba block
    p["in_proj_w"] = w((2 * dinner, dm))
    p["conv1d_w"] = w((cfg["d_conv"], dinner), 0.2)    # depthwise (k, C)
    p["conv1d_b"] = jnp.zeros((dinner,), jnp.float32)
    p["x_proj_w"] = w((dtr + 2 * ds, dinner))
    p["dt_proj_w"] = w((dinner, dtr), 0.2)
    p["dt_proj_b"] = jnp.full((dinner,), 0.1, jnp.float32)
    p["A_log"] = jnp.log(jnp.broadcast_to(
        jnp.arange(1, ds + 1, dtype=jnp.float32), (dinner, ds)))
    p["D"] = jnp.ones((dinner,), jnp.float32)
    p["out_proj_w"] = w((dm, dinner))
    # MLP head: 3x3 conv weights as 9 taps (tap, Cin, Cout), BN folded.
    p["mlp_conv_w"] = w((9, dm, dm), 0.02) * bn_s
    p["mlp_conv_b"] = jnp.zeros((dm,), jnp.float32)
    p["fc1_w"] = w((dm, h1)) * bn_s
    p["fc1_b"] = w((h1,), 0.01) * bn_s
    p["fc2_w"] = w((h1, h2)) * bn_s
    p["fc2_b"] = w((h2,), 0.01) * bn_s
    p["fc3_w"] = w((h2, nc))
    p["fc3_b"] = w((nc,), 0.01)
    return p


# ---------------------------------------------------------------------------
# Forward pass (glue in JAX, compute in Pallas kernels).
# ---------------------------------------------------------------------------
def mamba_block_forward(p, seq, cfg):
    B, L, dm = seq.shape
    dinner = p["in_proj_w"].shape[0] // 2
    din_p = _round_up(dinner, 128)     # lane-pad d_inner for dwconv / scan
    ds = cfg["d_state"]
    dtr = p["dt_proj_w"].shape[1]
    pad = din_p - dinner

    xz = mm(seq.reshape(B * L, dm), p["in_proj_w"].T)             # (B*L, 2*din)
    xs = jnp.pad(xz[:, :dinner].reshape(B, L, dinner),
                 ((0, 0), (0, 0), (0, pad)))
    z = jnp.pad(xz[:, dinner:].reshape(B, L, dinner),
                ((0, 0), (0, 0), (0, pad)))

    conv_w = jnp.pad(p["conv1d_w"], ((0, 0), (0, pad)))
    conv_b = jnp.pad(p["conv1d_b"], (0, pad))
    xc = dwconv_silu(xs, conv_w, conv_b)                          # (B, L, din_p)

    xproj_w = jnp.pad(p["x_proj_w"].T, ((0, pad), (0, 0)))        # (din_p, dtr+2ds)
    xdbl = mm(xc.reshape(B * L, din_p), xproj_w)
    dt = xdbl[:, :dtr]
    Bm = xdbl[:, dtr:dtr + ds].reshape(B, L, ds)
    Cm = xdbl[:, dtr + ds:].reshape(B, L, ds)

    delta = mm(dt, p["dt_proj_w"].T, p["dt_proj_b"], act="softplus")
    delta = jnp.pad(delta.reshape(B, L, dinner), ((0, 0), (0, 0), (0, pad)))

    A = jnp.pad((-jnp.exp(p["A_log"])).T, ((0, 0), (0, pad)))     # (ds, din_p)
    D = jnp.pad(p["D"], (0, pad)).reshape(1, din_p)

    y = selective_scan(delta, xc, Bm, Cm, A, D, z)                # (B, L, din_p)

    out_w = jnp.pad(p["out_proj_w"].T, ((0, pad), (0, 0)))        # (din_p, dm)
    return mm(y.reshape(B * L, din_p), out_w).reshape(B, L, dm)


def mamba_fusion_forward(p, img_emb, pc_emb, cfg):
    B, _, H, W = img_emb.shape
    HW = H * W
    dim, lf = cfg["dim"], cfg["last_feat"]
    assert H == lf and W == lf
    scales = list(range(1, lf, lf // 4))

    xx = np.linspace(-0.3, 0.3, lf, dtype=np.float32)
    grid_np = np.array(np.meshgrid(xx, xx), dtype=np.float32)     # (2, H, W)
    grid_b = jnp.broadcast_to(jnp.asarray(grid_np)[None], (B, 2, H, W))
    pc_exp = jnp.broadcast_to(pc_emb[:, :, None, None],
                              (B, pc_emb.shape[1], H, W))
    combined = jnp.concatenate([img_emb, grid_b, pc_exp], axis=1)
    Cc = combined.shape[1]

    comb_cl = jnp.transpose(combined, (0, 2, 3, 1)).reshape(B * HW, Cc)
    comb_cf = combined.reshape(B * Cc, HW)

    Pm_np = {s: pool_matrix(H, s) for s in scales}
    Qm_np = {s: interp_matrix(H, s) for s in scales}

    ppm = [combined]

    # pool layer 0: ConvBNReLU6 -> AdaptiveAvgPool2d(1) -> bilinear to (H, W)
    y0 = mm(comb_cl, p["ppm_w"][0], p["ppm_b"][0], act="relu6")
    y0 = y0.reshape(B, HW, dim).transpose(0, 2, 1).reshape(B * dim, HW)
    up0 = jnp.asarray(Pm_np[1] @ Qm_np[1])                        # global avg + bcast
    ppm.append(mm(y0, up0).reshape(B, dim, H, W))

    # pool layers 1..: AdaptiveAvgPool2d(s) -> ConvBNReLU6 -> bilinear to (H, W)
    for li, s in enumerate(scales[1:], start=1):
        ps = mm(comb_cf, jnp.asarray(Pm_np[s]))                   # (B*Cc, s*s)
        ps = ps.reshape(B, Cc, s * s).transpose(0, 2, 1).reshape(B * s * s, Cc)
        cs = mm(ps, p["ppm_w"][li], p["ppm_b"][li], act="relu6")  # (B*s*s, dim)
        cs = cs.reshape(B, s * s, dim).transpose(0, 2, 1).reshape(B * dim, s * s)
        it = mm(cs, jnp.asarray(Qm_np[s]))                        # (B*dim, HW)
        ppm.append(it.reshape(B, dim, H, W))

    xcat = jnp.concatenate(ppm, axis=1)                           # (B, chs, H, W)
    chs = xcat.shape[1]

    seq = jnp.transpose(xcat, (0, 2, 3, 1)).reshape(B, HW, chs)   # b c h w -> b (hw) c
    seq = mamba_block_forward(p, seq, cfg)
    return jnp.transpose(seq.reshape(B, H, W, chs), (0, 3, 1, 2)) # -> (B, chs, H, W)


def mlp_forward(p, x):
    # 3x3 ConvBNReLU6 + AdaptiveAvgPool2d(1) fused in one Pallas kernel.
    feat = conv3x3_gap_relu6(x, p["mlp_conv_w"], p["mlp_conv_b"])  # (B, C)
    # TODO(synk): Dropout layers are identity (eval mode); BatchNorm1d folded into fc weights.
    h = mm(feat, p["fc1_w"], p["fc1_b"], act="relu")
    h = mm(h, p["fc2_w"], p["fc2_b"], act="relu")
    return mm(h, p["fc3_w"], p["fc3_b"], act="softmax")            # return_type='softmax'


def mamba_fusion_decoder_forward(p, img_emb, pc_emb, cfg):
    x = mamba_fusion_forward(p, img_emb, pc_emb, cfg)
    return mlp_forward(p, x)


if __name__ == "__main__":
    cfg = dict(in_img=4, in_pc=6, dim=16, d_state=8, d_conv=4, expand=2,
               last_feat=8, hidden=(16, 16), num_classes=5)
    B = 2
    H = W = cfg["last_feat"]

    key = jax.random.PRNGKey(0)
    k_img, k_pc = jax.random.split(key)
    img_emb = jax.random.normal(k_img, (B, cfg["in_img"], H, W), jnp.float32)
    pc_emb = jax.random.normal(k_pc, (B, cfg["in_pc"]), jnp.float32)

    params = init_params(jax.random.PRNGKey(42), cfg)

    out = mamba_fusion_decoder_forward(params, img_emb, pc_emb, cfg)
    out = jax.block_until_ready(out)

    assert out.shape == (B, cfg["num_classes"])
    assert bool(jnp.all(jnp.isfinite(out)))
    assert bool(jnp.all(jnp.abs(jnp.sum(out, axis=-1) - 1.0) < 1e-4))
    print("KERNEL_OK")
</pallas_src>

<mosaic_0001>
module attributes {stable_mosaic.version = 11 : i64} {
  func.func @_mm_kernel(%arg0: i32, %arg1: i32, %arg2: i32, %arg3: memref<128x128xbf16, #tpu.memory_space<vmem>>, %arg4: memref<128x128xbf16, #tpu.memory_space<vmem>>, %arg5: memref<1x128xf32, #tpu.memory_space<vmem>>, %arg6: memref<128x128xf32, #tpu.memory_space<vmem>>, %arg7: memref<128x128xf32, #tpu.memory_space<vmem>>) attributes {dimension_semantics = [#tpu.dimension_semantics<parallel>, #tpu.dimension_semantics<parallel>, #tpu.dimension_semantics<arbitrary>], iteration_bounds = array<i64: 1, 1, 1>, scalar_prefetch = 0 : i64, scratch_operands = 1 : i64, tpu.core_type = #tpu.core_type<tc>, window_params = [{transform_indices = @transform_0, window_bounds = array<i64: 128, 128>}, {transform_indices = @transform_1, window_bounds = array<i64: 128, 128>}, {transform_indices = @transform_2, window_bounds = array<i64: 1, 128>}, {transform_indices = @transform_3, window_bounds = array<i64: 128, 128>}]} {
    %c0_i32 = arith.constant 0 : i32
    %0 = arith.cmpi eq, %arg2, %c0_i32 : i32
    %1 = arith.extui %0 : i1 to i32
    %c0_i32_0 = arith.constant 0 : i32
    %2 = arith.cmpi ne, %1, %c0_i32_0 : i32
    scf.if %2 {
      %cst_10 = arith.constant 0.000000e+00 : f32
      %12 = vector.broadcast %cst_10 : f32 to vector<128x128xf32>
      %c0_11 = arith.constant 0 : index
      %c0_12 = arith.constant 0 : index
      %13 = vector.load %arg7[%c0_11, %c0_12] : memref<128x128xf32, #tpu.memory_space<vmem>>, vector<128x128xf32>
      tpu.vector_store %arg7[%c0_11, %c0_12], %12 {strides = array<i32>} : memref<128x128xf32, #tpu.memory_space<vmem>>, vector<128x128xf32>,
    } else {
    }
    %c0 = arith.constant 0 : index
    %c0_1 = arith.constant 0 : index
    %3 = vector.load %arg7[%c0, %c0_1] : memref<128x128xf32, #tpu.memory_space<vmem>>, vector<128x128xf32>
    %c0_2 = arith.constant 0 : index
    %c0_3 = arith.constant 0 : index
    %4 = vector.load %arg3[%c0_2, %c0_3] : memref<128x128xbf16, #tpu.memory_space<vmem>>, vector<128x128xbf16>
    %c0_4 = arith.constant 0 : index
    %c0_5 = arith.constant 0 : index
    %5 = vector.load %arg4[%c0_4, %c0_5] : memref<128x128xbf16, #tpu.memory_space<vmem>>, vector<128x128xbf16>
    %cst = arith.constant dense<0.000000e+00> : vector<128x128xf32>
    %6 = tpu.matmul %4, %5, %cst {dimension_numbers = #tpu.dot_dimension_numbers<[1], [0], [0], [1], [0, 0, 1, 1], [], []>} : vector<128x128xbf16>, vector<128x128xbf16>, vector<128x128xf32> -> vector<128x128xf32>
    %7 = arith.addf %3, %6 : vector<128x128xf32>
    %c0_6 = arith.constant 0 : index
    %c0_7 = arith.constant 0 : index
    %8 = vector.load %arg7[%c0_6, %c0_7] : memref<128x128xf32, #tpu.memory_space<vmem>>, vector<128x128xf32>
    tpu.vector_store %arg7[%c0_6, %c0_7], %7 {strides = array<i32>} : memref<128x128xf32, #tpu.memory_space<vmem>>, vector<128x128xf32>,
    %c0_i32_8 = arith.constant 0 : i32
    %9 = arith.cmpi eq, %arg2, %c0_i32_8 : i32
    %10 = arith.extui %9 : i1 to i32
    %c0_i32_9 = arith.constant 0 : i32
    %11 = arith.cmpi ne, %10, %c0_i32_9 : i32
    scf.if %11 {
      %c0_10 = arith.constant 0 : index
      %c0_11 = arith.constant 0 : index
      %12 = vector.load %arg7[%c0_10, %c0_11] : memref<128x128xf32, #tpu.memory_space<vmem>>, vector<128x128xf32>
      %c0_12 = arith.constant 0 : index
      %c0_13 = arith.constant 0 : index
      %13 = vector.load %arg5[%c0_12, %c0_13] : memref<1x128xf32, #tpu.memory_space<vmem>>, vector<1x128xf32>
      %14 = vector.broadcast %13 : vector<1x128xf32> to vector<128x128xf32>
      %15 = arith.addf %12, %14 : vector<128x128xf32>
      %cst_14 = arith.constant 0.000000e+00 : f32
      %cst_15 = arith.constant 6.000000e+00 : f32
      %16 = vector.broadcast %cst_14 : f32 to vector<128x128xf32>
      %17 = arith.maximumf %16, %15 : vector<128x128xf32>
      %18 = vector.broadcast %cst_15 : f32 to vector<128x128xf32>
      %19 = arith.minimumf %18, %17 : vector<128x128xf32>
      %c0_16 = arith.constant 0 : index
      %c0_17 = arith.constant 0 : index
      %20 = vector.load %arg6[%c0_16, %c0_17] : memref<128x128xf32, #tpu.memory_space<vmem>>, vector<128x128xf32>
      tpu.vector_store %arg6[%c0_16, %c0_17], %19 {strides = array<i32>} : memref<128x128xf32, #tpu.memory_space<vmem>>, vector<128x128xf32>,
    } else {
    }
    return
  }
  func.func @transform_0(%arg0: i32, %arg1: i32, %arg2: i32) -> (i32, i32) {
    %c0_i32 = arith.constant 0 : i32
    return %arg0, %arg2 : i32, i32
  }
  func.func @transform_1(%arg0: i32, %arg1: i32, %arg2: i32) -> (i32, i32) {
    %c0_i32 = arith.constant 0 : i32
    return %arg2, %arg1 : i32, i32
  }
  func.func @transform_2(%arg0: i32, %arg1: i32, %arg2: i32) -> (i32, i32) {
    %c0_i32 = arith.constant 0 : i32
    %c0_i32_0 = arith.constant 0 : i32
    return %c0_i32, %arg1 : i32, i32
  }
  func.func @transform_3(%arg0: i32, %arg1: i32, %arg2: i32) -> (i32, i32) {
    %c0_i32 = arith.constant 0 : i32
    return %arg0, %arg1 : i32, i32
  }
}

</mosaic_0001>

<llo_original>
// kernel: tpu_custom_call.1
$region0: #{tpu_custom_call.1}
  #allocation0 [shape = 'u32[]', space=smem, size = 0x4, offset = 0x4, fixed_abs, tag = 'smem constant byte address 0x4 - core index']
  #allocation1 [shape = 'u32[144,128]{1,0:T(1,128)}', space=vmem, size = 0x12000, scoped, tag = 'internal scratch']
  #allocation2 [shape = 'f32[128,128]{1,0:T(8,128)}', space=vmem, size = 0x10000, scoped, tag = 'scratch operand']
  %s0 = inlined_call_operand.hbm [shape: bf16[128,128], index: 0, kind: input, shape index: {}]
  %s1 = inlined_call_operand.hbm [shape: bf16[128,128], index: 1, kind: input, shape index: {}]
  %s2 = inlined_call_operand.vmem [shape: f32[1,128], index: 2, kind: input, shape index: {}]
  %s3 = inlined_call_operand.hbm [shape: f32[128,128], index: 3, kind: output, shape index: {}]
  %s4 = sld [smem:[#allocation0]]
  $region38: #{tpu_custom_call.1} parent=0
    _
  %s6 = ssub.s32 1, %s4
  %s7 = scalar_select 0, %s6, %s4
  $region1: #{tpu_custom_call.1} parent=0
    #allocation3 [shape = 'u8[32768]{0}', space=vmem, size = 0x8000, scoped, tag = 'input window, operand 0, single buffered']
    #allocation4 [shape = 's32[1]{0}', space=sflag, size = 0x4, scoped, tag = 'scoped memory for tpu_custom_call.1']
    #allocation5 [shape = 's32[1]{0}', space=sflag, size = 0x4, scoped, tag = 'scoped memory for tpu_custom_call.1']
    #allocation6 [shape = 'u8[32768]{0}', space=vmem, size = 0x8000, scoped, tag = 'input window, operand 1, single buffered']
    #allocation7 [shape = 's32[1]{0}', space=sflag, size = 0x4, scoped, tag = 'scoped memory for tpu_custom_call.1']
    #allocation8 [shape = 'u8[65536]{0}', space=vmem, size = 0x10000, scoped, tag = 'output window, operand 0, single buffered']
    %8 = vsyncpa [#allocation4], 0
    %9 = vsyncpa [#allocation7], 0
    %10 = vsyncpa [#allocation5], 0
    // Predicated region
    $region2: #{tpu_custom_call.1} parent=1 // pred_check
      _
    $region3: #{tpu_custom_call.1} parent=1 // pred_check_branch
      %12 = sbr.rel (0) target = $region5
    $region4: #{tpu_custom_call.1} parent=1 // pred_region
      %s14 = ssub.s32 1024, 1024
      %15 = vsyncadd [#allocation4], %s14
      %s16 = sshll.u32 [#allocation3], 4
      %s17 = int_to_ptr.vmem [resolvable:$true] %s16
      %22 = dma.hbm_to_vmem [thread:$0]  %s0, 1024, %s17, [#allocation4], 64, 64, 4
    $region5: #{tpu_custom_call.1} parent=1 // pred_fallthru
      _
    // Predicated region
    $region6: #{tpu_custom_call.1} parent=1 // pred_check
      _
    $region7: #{tpu_custom_call.1} parent=1 // pred_check_branch
      %24 = sbr.rel (0) target = $region9
    $region8: #{tpu_custom_call.1} parent=1 // pred_region
      %s26 = ssub.s32 1024, 1024
      %27 = vsyncadd [#allocation7], %s26
      %s28 = sshll.u32 [#allocation6], 4
      %s29 = int_to_ptr.vmem [resolvable:$true] %s28
      %34 = dma.hbm_to_vmem [thread:$0]  %s1, 1024, %s29, [#allocation7], 64, 64, 4
    $region9: #{tpu_custom_call.1} parent=1 // pred_fallthru
      _
    // Predicated region
    $region10: #{tpu_custom_call.1} parent=1 // pred_check
      _
    $region11: #{tpu_custom_call.1} parent=1 // pred_check_branch
      %36 = sbr.rel (0) target = $region13
    $region12: #{tpu_custom_call.1} parent=1 // pred_region
      _
    $region13: #{tpu_custom_call.1} parent=1 // pred_fallthru
      _
    // Predicated region
    $region14: #{tpu_custom_call.1} parent=1 // pred_check
      _
    $region15: #{tpu_custom_call.1} parent=1 // pred_check_branch
      %38 = sbr.rel (0) target = $region17
    $region16: #{tpu_custom_call.1} parent=1 // pred_region
      %39 = dma.done [#allocation4], 1024
    $region17: #{tpu_custom_call.1} parent=1 // pred_fallthru
      _
    // Predicated region
    $region18: #{tpu_custom_call.1} parent=1 // pred_check
      _
    $region19: #{tpu_custom_call.1} parent=1 // pred_check_branch
      %41 = sbr.rel (0) target = $region21
    $region20: #{tpu_custom_call.1} parent=1 // pred_region
      %42 = dma.done [#allocation7], 1024
    $region21: #{tpu_custom_call.1} parent=1 // pred_fallthru
      _
    %p44 = scmp.eq.s32.totalorder 0, 0
    // Predicated region
    $region22: #{tpu_custom_call.1} parent=1 // pred_check
      %p45 = pneg %p44
    $region23: #{tpu_custom_call.1} parent=1 // pred_check_branch
      %47 = sbr.rel (%p45) target = $region25
    $region24: #{tpu_custom_call.1} parent=1 // pred_region
      %48 = vst [vmem:[#allocation2] sm:$0xff] 0.0
      %49 = vst [vmem:[#allocation2 + $0x8] sm:$0xff] 0.0
      %50 = vst [vmem:[#allocation2 + $0x10] sm:$0xff] 0.0
      %51 = vst [vmem:[#allocation2 + $0x18] sm:$0xff] 0.0
      %52 = vst [vmem:[#allocation2 + $0x20] sm:$0xff] 0.0
      %53 = vst [vmem:[#allocation2 + $0x28] sm:$0xff] 0.0
      %54 = vst [vmem:[#allocation2 + $0x30] sm:$0xff] 0.0
      %55 = vst [vmem:[#allocation2 + $0x38] sm:$0xff] 0.0
      %56 = vst [vmem:[#allocation2 + $0x40] sm:$0xff] 0.0
      %57 = vst [vmem:[#allocation2 + $0x48] sm:$0xff] 0.0
      %58 = vst [vmem:[#allocation2 + $0x50] sm:$0xff] 0.0
      %59 = vst [vmem:[#allocation2 + $0x58] sm:$0xff] 0.0
      %60 = vst [vmem:[#allocation2 + $0x60] sm:$0xff] 0.0
      %61 = vst [vmem:[#allocation2 + $0x68] sm:$0xff] 0.0
      %62 = vst [vmem:[#allocation2 + $0x70] sm:$0xff] 0.0
      %63 = vst [vmem:[#allocation2 + $0x78] sm:$0xff] 0.0
    $region25: #{tpu_custom_call.1} parent=1 // pred_fallthru
      _
    %v64 = vld [vmem:[#allocation2] sm:$0xff]
    %v65 = vld [vmem:[#allocation2 + $0x8] sm:$0xff]
    %v66 = vld [vmem:[#allocation2 + $0x10] sm:$0xff]
    %v67 = vld [vmem:[#allocation2 + $0x18] sm:$0xff]
    %v68 = vld [vmem:[#allocation2 + $0x20] sm:$0xff]
    %v69 = vld [vmem:[#allocation2 + $0x28] sm:$0xff]
    %v70 = vld [vmem:[#allocation2 + $0x30] sm:$0xff]
    %v71 = vld [vmem:[#allocation2 + $0x38] sm:$0xff]
    %v72 = vld [vmem:[#allocation2 + $0x40] sm:$0xff]
    %v73 = vld [vmem:[#allocation2 + $0x48] sm:$0xff]
    %v74 = vld [vmem:[#allocation2 + $0x50] sm:$0xff]
    %v75 = vld [vmem:[#allocation2 + $0x58] sm:$0xff]
    %v76 = vld [vmem:[#allocation2 + $0x60] sm:$0xff]
    %v77 = vld [vmem:[#allocation2 + $0x68] sm:$0xff]
    %v78 = vld [vmem:[#allocation2 + $0x70] sm:$0xff]
    %v79 = vld [vmem:[#allocation2 + $0x78] sm:$0xff]
    %v80 = vld [vmem:[#allocation3] sm:$0xf]
    %v81 = vld [vmem:[#allocation3 + $0x4] sm:$0xf]
    %v82 = vld [vmem:[#allocation3 + $0x8] sm:$0xf]
    %v83 = vld [vmem:[#allocation3 + $0xc] sm:$0xf]
    %v84 = vld [vmem:[#allocation3 + $0x10] sm:$0xf]
    %v85 = vld [vmem:[#allocation3 + $0x14] sm:$0xf]
    %v86 = vld [vmem:[#allocation3 + $0x18] sm:$0xf]
    %v87 = vld [vmem:[#allocation3 + $0x1c] sm:$0xf]
    %v88 = vld [vmem:[#allocation3 + $0x20] sm:$0xf]
    %v89 = vld [vmem:[#allocation3 + $0x24] sm:$0xf]
    %v90 = vld [vmem:[#allocation3 + $0x28] sm:$0xf]
    %v91 = vld [vmem:[#allocation3 + $0x2c] sm:$0xf]
    %v92 = vld [vmem:[#allocation3 + $0x30] sm:$0xf]
    %v93 = vld [vmem:[#allocation3 + $0x34] sm:$0xf]
    %v94 = vld [vmem:[#allocation3 + $0x38] sm:$0xf]
    %v95 = vld [vmem:[#allocation3 + $0x3c] sm:$0xf]
    %v96 = vld [vmem:[#allocation6] sm:$0xf]
    %v97 = vld [vmem:[#allocation6 + $0x4] sm:$0xf]
    %v98 = vld [vmem:[#allocation6 + $0x8] sm:$0xf]
    %v99 = vld [vmem:[#allocation6 + $0xc] sm:$0xf]
    %v100 = vld [vmem:[#allocation6 + $0x10] sm:$0xf]
    %v101 = vld [vmem:[#allocation6 + $0x14] sm:$0xf]
    %v102 = vld [vmem:[#allocation6 + $0x18] sm:$0xf]
    %v103 = vld [vmem:[#allocation6 + $0x1c] sm:$0xf]
    %v104 = vld [vmem:[#allocation6 + $0x20] sm:$0xf]
    %v105 = vld [vmem:[#allocation6 + $0x24] sm:$0xf]
    %v106 = vld [vmem:[#allocation6 + $0x28] sm:$0xf]
    %v107 = vld [vmem:[#allocation6 + $0x2c] sm:$0xf]
    %v108 = vld [vmem:[#allocation6 + $0x30] sm:$0xf]
    %v109 = vld [vmem:[#allocation6 + $0x34] sm:$0xf]
    %v110 = vld [vmem:[#allocation6 + $0x38] sm:$0xf]
    %v111 = vld [vmem:[#allocation6 + $0x3c] sm:$0xf]
    %v128 = vunpack.c.l.b16 %v80
    %v129 = vunpack.c.l.b16 %v81
    %v130 = vunpack.c.l.b16 %v82
    %v131 = vunpack.c.l.b16 %v83
    %v132 = vunpack.c.l.b16 %v84
    %v133 = vunpack.c.l.b16 %v85
    %v134 = vunpack.c.l.b16 %v86
    %v135 = vunpack.c.l.b16 %v87
    %v136 = vunpack.c.l.b16 %v88
    %v137 = vunpack.c.l.b16 %v89
    %v138 = vunpack.c.l.b16 %v90
    %v139 = vunpack.c.l.b16 %v91
    %v140 = vunpack.c.l.b16 %v92
    %v141 = vunpack.c.l.b16 %v93
    %v142 = vunpack.c.l.b16 %v94
    %v143 = vunpack.c.l.b16 %v95
    %v144 = vpack.c.b16 %v129, %v128
    %v145 = vpack.c.b16 %v131, %v130
    %v146 = vpack.c.b16 %v133, %v132
    %v147 = vpack.c.b16 %v135, %v134
    %v148 = vpack.c.b16 %v137, %v136
    %v149 = vpack.c.b16 %v139, %v138
    %v150 = vpack.c.b16 %v141, %v140
    %v151 = vpack.c.b16 %v143, %v142
    %v176 = vunpack.c.l.b16 %v96
    %v177 = vunpack.c.l.b16 %v97
    %v178 = vunpack.c.l.b16 %v98
    %v179 = vunpack.c.l.b16 %v99
    %v180 = vunpack.c.l.b16 %v100
    %v181 = vunpack.c.l.b16 %v101
    %v182 = vunpack.c.l.b16 %v102
    %v183 = vunpack.c.l.b16 %v103
    %v184 = vunpack.c.l.b16 %v104
    %v185 = vunpack.c.l.b16 %v105
    %v186 = vunpack.c.l.b16 %v106
    %v187 = vunpack.c.l.b16 %v107
    %v188 = vunpack.c.l.b16 %v108
    %v189 = vunpack.c.l.b16 %v109
    %v190 = vunpack.c.l.b16 %v110
    %v191 = vunpack.c.l.b16 %v111
    %v192 = vpack.c.b16 %v177, %v176
    %v193 = vpack.c.b16 %v179, %v178
    %v194 = vpack.c.b16 %v181, %v180
    %v195 = vpack.c.b16 %v183, %v182
    %v196 = vpack.c.b16 %v185, %v184
    %v197 = vpack.c.b16 %v187, %v186
    %v198 = vpack.c.b16 %v189, %v188
    %v199 = vpack.c.b16 %v191, %v190
    %208 = vmatprep.subr.bf16.mxu0 0
    %209 = vmatpush1.bf16.msra.mxu0 %v192
    %210 = vmatprep.subr.bf16.mxu0 0
    %211 = vmatpush1.bf16.msra.mxu0 %v193
    %212 = vmatprep.subr.bf16.mxu0 0
    %213 = vmatpush1.bf16.msra.mxu0 %v194
    %214 = vmatprep.subr.bf16.mxu0 0
    %215 = vmatpush1.bf16.msra.mxu0 %v195
    %216 = vmatprep.subr.bf16.mxu0 0
    %217 = vmatpush1.bf16.msra.mxu0 %v196
    %218 = vmatprep.subr.bf16.mxu0 0
    %219 = vmatpush1.bf16.msra.mxu0 %v197
    %220 = vmatprep.subr.bf16.mxu0 0
    %221 = vmatpush1.bf16.msra.mxu0 %v198
    %222 = vmatprep.subr.bf16.mxu0 0
    %223 = vmatpush1.bf16.msra.mxu0 %v199
    %224 = vmatprep.subr.bf16.mxu0 0
    %225 = vmatpush1.bf16.msra.mxu0 0
    %226 = vmatprep.subr.bf16.mxu0 0
    %227 = vmatpush1.bf16.msra.mxu0 0
    %228 = vmatprep.subr.bf16.mxu0 0
    %229 = vmatpush1.bf16.msra.mxu0 0
    %230 = vmatprep.subr.bf16.mxu0 0
    %231 = vmatpush1.bf16.msra.mxu0 0
    %232 = vmatprep.subr.bf16.mxu0 0
    %233 = vmatpush1.bf16.msra.mxu0 0
    %234 = vmatprep.subr.bf16.mxu0 0
    %235 = vmatpush1.bf16.msra.mxu0 0
    %236 = vmatprep.subr.bf16.mxu0 0
    %237 = vmatpush1.bf16.msra.mxu0 0
    %238 = vmatprep.subr.bf16.mxu0 0
    %239 = vmatpush1.bf16.msra.mxu0 0
    %240 = vmatprep.mubr.bf16.mxu0 0
    %241 = vmatmul.mubr.bf16.gmra.mrb[0].mxu0 %v144
    %v242 = vpop.f32.mrb[0].mxu0
    %v243 = vadd.f32 0.0, %v242
    %v244 = vpop.f32.mrb[0].mxu0
    %v245 = vpop.f32.mrb[0].mxu0
    %v246 = vadd.f32 0.0, %v245
    %v247 = vpop.f32.mrb[0].mxu0
    %248 = vmatprep.mubr.bf16.mxu0 0
    %249 = vmatmul.mubr.bf16.gmra.mrb[0].mxu0 %v145
    %v250 = vpop.f32.mrb[0].mxu0
    %v251 = vadd.f32 0.0, %v250
    %v252 = vpop.f32.mrb[0].mxu0
    %v253 = vpop.f32.mrb[0].mxu0
    %v254 = vadd.f32 0.0, %v253
    %v255 = vpop.f32.mrb[0].mxu0
    %256 = vmatprep.mubr.bf16.mxu0 0
    %257 = vmatmul.mubr.bf16.gmra.mrb[0].mxu0 %v146
    %v258 = vpop.f32.mrb[0].mxu0
    %v259 = vadd.f32 0.0, %v258
    %v260 = vpop.f32.mrb[0].mxu0
    %v261 = vpop.f32.mrb[0].mxu0
    %v262 = vadd.f32 0.0, %v261
    %v263 = vpop.f32.mrb[0].mxu0
    %264 = vmatprep.mubr.bf16.mxu0 0
    %265 = vmatmul.mubr.bf16.gmra.mrb[0].mxu0 %v147
    %v266 = vpop.f32.mrb[0].mxu0
    %v267 = vadd.f32 0.0, %v266
    %v268 = vpop.f32.mrb[0].mxu0
    %v269 = vpop.f32.mrb[0].mxu0
    %v270 = vadd.f32 0.0, %v269
    %v271 = vpop.f32.mrb[0].mxu0
    %272 = vmatprep.mubr.bf16.mxu0 0
    %273 = vmatmul.mubr.bf16.gmra.mrb[0].mxu0 %v148
    %v274 = vpop.f32.mrb[0].mxu0
    %v275 = vadd.f32 0.0, %v274
    %v276 = vpop.f32.mrb[0].mxu0
    %v277 = vpop.f32.mrb[0].mxu0
    %v278 = vadd.f32 0.0, %v277
    %v279 = vpop.f32.mrb[0].mxu0
    %280 = vmatprep.mubr.bf16.mxu0 0
    %281 = vmatmul.mubr.bf16.gmra.mrb[0].mxu0 %v149
    %v282 = vpop.f32.mrb[0].mxu0
    %v283 = vadd.f32 0.0, %v282
    %v284 = vpop.f32.mrb[0].mxu0
    %v285 = vpop.f32.mrb[0].mxu0
    %v286 = vadd.f32 0.0, %v285
    %v287 = vpop.f32.mrb[0].mxu0
    %288 = vmatprep.mubr.bf16.mxu0 0
    %289 = vmatmul.mubr.bf16.gmra.mrb[0].mxu0 %v150
    %v290 = vpop.f32.mrb[0].mxu0
    %v291 = vadd.f32 0.0, %v290
    %v292 = vpop.f32.mrb[0].mxu0
    %v293 = vpop.f32.mrb[0].mxu0
    %v294 = vadd.f32 0.0, %v293
    %v295 = vpop.f32.mrb[0].mxu0
    %296 = vmatprep.mubr.bf16.mxu0 0
    %297 = vmatmul.mubr.bf16.gmra.mrb[0].mxu0 %v151
    %v298 = vpop.f32.mrb[0].mxu0
    %v299 = vadd.f32 0.0, %v298
    %v300 = vpop.f32.mrb[0].mxu0
    %v301 = vpop.f32.mrb[0].mxu0
    %v302 = vadd.f32 0.0, %v301
    %v303 = vpop.f32.mrb[0].mxu0
    %304 = vdwg.mxu0
    %v305 = vadd.f32 %v64, %v243
    %v306 = vadd.f32 %v65, %v246
    %v307 = vadd.f32 %v66, %v251
    %v308 = vadd.f32 %v67, %v254
    %v309 = vadd.f32 %v68, %v259
    %v310 = vadd.f32 %v69, %v262
    %v311 = vadd.f32 %v70, %v267
    %v312 = vadd.f32 %v71, %v270
    %v313 = vadd.f32 %v72, %v275
    %v314 = vadd.f32 %v73, %v278
    %v315 = vadd.f32 %v74, %v283
    %v316 = vadd.f32 %v75, %v286
    %v317 = vadd.f32 %v76, %v291
    %v318 = vadd.f32 %v77, %v294
    %v319 = vadd.f32 %v78, %v299
    %v320 = vadd.f32 %v79, %v302
    %321 = vst [vmem:[#allocation2] sm:$0xff] %v305
    %322 = vst [vmem:[#allocation2 + $0x8] sm:$0xff] %v306
    %323 = vst [vmem:[#allocation2 + $0x10] sm:$0xff] %v307
    %324 = vst [vmem:[#allocation2 + $0x18] sm:$0xff] %v308
    %325 = vst [vmem:[#allocation2 + $0x20] sm:$0xff] %v309
    %326 = vst [vmem:[#allocation2 + $0x28] sm:$0xff] %v310
    %327 = vst [vmem:[#allocation2 + $0x30] sm:$0xff] %v311
    %328 = vst [vmem:[#allocation2 + $0x38] sm:$0xff] %v312
    %329 = vst [vmem:[#allocation2 + $0x40] sm:$0xff] %v313
    %330 = vst [vmem:[#allocation2 + $0x48] sm:$0xff] %v314
    %331 = vst [vmem:[#allocation2 + $0x50] sm:$0xff] %v315
    %332 = vst [vmem:[#allocation2 + $0x58] sm:$0xff] %v316
    %333 = vst [vmem:[#allocation2 + $0x60] sm:$0xff] %v317
    %334 = vst [vmem:[#allocation2 + $0x68] sm:$0xff] %v318
    %335 = vst [vmem:[#allocation2 + $0x70] sm:$0xff] %v319
    %336 = vst [vmem:[#allocation2 + $0x78] sm:$0xff] %v320
    // Predicated region
    $region26: #{tpu_custom_call.1} parent=1 // pred_check
      %p337 = pneg %p44
    $region27: #{tpu_custom_call.1} parent=1 // pred_check_branch
      %339 = sbr.rel (%p337) target = $region29
    $region28: #{tpu_custom_call.1} parent=1 // pred_region
      %v340 = vld [vmem:[#allocation2] sm:$0xff]
      %v341 = vld [vmem:[#allocation2 + $0x8] sm:$0xff]
      %v342 = vld [vmem:[#allocation2 + $0x10] sm:$0xff]
      %v343 = vld [vmem:[#allocation2 + $0x18] sm:$0xff]
      %v344 = vld [vmem:[#allocation2 + $0x20] sm:$0xff]
      %v345 = vld [vmem:[#allocation2 + $0x28] sm:$0xff]
      %v346 = vld [vmem:[#allocation2 + $0x30] sm:$0xff]
      %v347 = vld [vmem:[#allocation2 + $0x38] sm:$0xff]
      %v348 = vld [vmem:[#allocation2 + $0x40] sm:$0xff]
      %v349 = vld [vmem:[#allocation2 + $0x48] sm:$0xff]
      %v350 = vld [vmem:[#allocation2 + $0x50] sm:$0xff]
      %v351 = vld [vmem:[#allocation2 + $0x58] sm:$0xff]
      %v352 = vld [vmem:[#allocation2 + $0x60] sm:$0xff]
      %v353 = vld [vmem:[#allocation2 + $0x68] sm:$0xff]
      %v354 = vld [vmem:[#allocation2 + $0x70] sm:$0xff]
      %v355 = vld [vmem:[#allocation2 + $0x78] sm:$0xff]
      %v356 = vld [vmem:[%s2] sm:$0x1]
      %v358 = vlaneseq
      %v359 = vshrl.u32 %v358, 7
      %v360 = vsub.s32 0, %v359
      %v361 = vrot.slane %v356, %v360
      %v363 = vadd.f32 %v340, %v361
      %v364 = vadd.f32 %v341, %v361
      %v365 = vadd.f32 %v342, %v361
      %v366 = vadd.f32 %v343, %v361
      %v367 = vadd.f32 %v344, %v361
      %v368 = vadd.f32 %v345, %v361
      %v369 = vadd.f32 %v346, %v361
      %v370 = vadd.f32 %v347, %v361
      %v371 = vadd.f32 %v348, %v361
      %v372 = vadd.f32 %v349, %v361
      %v373 = vadd.f32 %v350, %v361
      %v374 = vadd.f32 %v351, %v361
      %v375 = vadd.f32 %v352, %v361
      %v376 = vadd.f32 %v353, %v361
      %v377 = vadd.f32 %v354, %v361
      %v378 = vadd.f32 %v355, %v361
      %v379 = vmax.f32 %v363, 0.0
      %v380 = vmax.f32 %v364, 0.0
      %v381 = vmax.f32 %v365, 0.0
      %v382 = vmax.f32 %v366, 0.0
      %v383 = vmax.f32 %v367, 0.0
      %v384 = vmax.f32 %v368, 0.0
      %v385 = vmax.f32 %v369, 0.0
      %v386 = vmax.f32 %v370, 0.0
      %v387 = vmax.f32 %v371, 0.0
      %v388 = vmax.f32 %v372, 0.0
      %v389 = vmax.f32 %v373, 0.0
      %v390 = vmax.f32 %v374, 0.0
      %v391 = vmax.f32 %v375, 0.0
      %v392 = vmax.f32 %v376, 0.0
      %v393 = vmax.f32 %v377, 0.0
      %v394 = vmax.f32 %v378, 0.0
      %v395 = vmin.f32 %v379, 6.0
      %v396 = vmin.f32 %v380, 6.0
      %v397 = vmin.f32 %v381, 6.0
      %v398 = vmin.f32 %v382, 6.0
      %v399 = vmin.f32 %v383, 6.0
      %v400 = vmin.f32 %v384, 6.0
      %v401 = vmin.f32 %v385, 6.0
      %v402 = vmin.f32 %v386, 6.0
      %v403 = vmin.f32 %v387, 6.0
      %v404 = vmin.f32 %v388, 6.0
      %v405 = vmin.f32 %v389, 6.0
      %v406 = vmin.f32 %v390, 6.0
      %v407 = vmin.f32 %v391, 6.0
      %v408 = vmin.f32 %v392, 6.0
      %v409 = vmin.f32 %v393, 6.0
      %v410 = vmin.f32 %v394, 6.0
      %411 = vst [vmem:[#allocation8] sm:$0xff] %v395
      %412 = vst [vmem:[#allocation8 + $0x8] sm:$0xff] %v396
      %413 = vst [vmem:[#allocation8 + $0x10] sm:$0xff] %v397
      %414 = vst [vmem:[#allocation8 + $0x18] sm:$0xff] %v398
      %415 = vst [vmem:[#allocation8 + $0x20] sm:$0xff] %v399
      %416 = vst [vmem:[#allocation8 + $0x28] sm:$0xff] %v400
      %417 = vst [vmem:[#allocation8 + $0x30] sm:$0xff] %v401
      %418 = vst [vmem:[#allocation8 + $0x38] sm:$0xff] %v402
      %419 = vst [vmem:[#allocation8 + $0x40] sm:$0xff] %v403
      %420 = vst [vmem:[#allocation8 + $0x48] sm:$0xff] %v404
      %421 = vst [vmem:[#allocation8 + $0x50] sm:$0xff] %v405
      %422 = vst [vmem:[#allocation8 + $0x58] sm:$0xff] %v406
      %423 = vst [vmem:[#allocation8 + $0x60] sm:$0xff] %v407
      %424 = vst [vmem:[#allocation8 + $0x68] sm:$0xff] %v408
      %425 = vst [vmem:[#allocation8 + $0x70] sm:$0xff] %v409
      %426 = vst [vmem:[#allocation8 + $0x78] sm:$0xff] %v410
    $region29: #{tpu_custom_call.1} parent=1 // pred_fallthru
      _
    // Predicated region
    $region30: #{tpu_custom_call.1} parent=1 // pred_check
      _
    $region31: #{tpu_custom_call.1} parent=1 // pred_check_branch
      %428 = sbr.rel (0) target = $region33
    $region32: #{tpu_custom_call.1} parent=1 // pred_region
      %s430 = ssub.s32 2048, 2048
      %431 = vsyncadd [#allocation5], %s430
      %s432 = sshll.u32 [#allocation8], 4
      %s433 = int_to_ptr.vmem [resolvable:$true] %s432
      %438 = dma.vmem_to_hbm [thread:$0]  %s433, 2048, %s3, [#allocation5], 128, 128, 8
    $region33: #{tpu_custom_call.1} parent=1 // pred_fallthru
      _
    // Predicated region
    $region34: #{tpu_custom_call.1} parent=1 // pred_check
      _
    $region35: #{tpu_custom_call.1} parent=1 // pred_check_branch
      %440 = sbr.rel (0) target = $region37
    $region36: #{tpu_custom_call.1} parent=1 // pred_region
      %441 = dma.done [#allocation5], 2048
    $region37: #{tpu_custom_call.1} parent=1 // pred_fallthru
      _
    %442 = vsyncpa [#allocation4], 1
    %443 = vsyncpa [#allocation7], 1
    %444 = vsyncpa [#allocation5], 1

</llo_original>
